<compile_context>
chip_gen: v7x
topology: tpu7x:2x2x1
jax: 0.10.0
libtpu: 0.0.40
codegen_flags: <defaults>
</compile_context>

<pallas_src>
import functools

import jax
import jax.numpy as jnp
from jax.experimental import pallas as pl
from jax.experimental.pallas import tpu as pltpu


def _make_linear_block_kernel(*, norm: bool, act: bool, eps: float):
    """Kernel factory: `norm` / `act` are static Python flags (per-config)."""
    neg_slope = 0.2

    if norm:
        def kernel(x_ref, w_ref, gamma_ref, beta_ref, o_ref, acc_ref):
            k = pl.program_id(1)

            @pl.when(k == 0)
            def _init():
                acc_ref[...] = jnp.zeros_like(acc_ref)

            # bf16 tiles in, f32 accumulation on the MXU.
            acc_ref[...] += jnp.dot(
                x_ref[...], w_ref[...], preferred_element_type=jnp.float32)

            @pl.when(k == pl.num_programs(1) - 1)
            def _finalize():
                y = acc_ref[...]
                # BatchNorm1d training forward: biased batch stats over the
                # (fully resident) batch dimension. The nn.Linear bias cancels
                # under the mean subtraction, so it is never loaded.
                mean = jnp.mean(y, axis=0, keepdims=True)
                d = y - mean                       # reused for var AND norm
                var = jnp.mean(d * d, axis=0, keepdims=True)
                scale = gamma_ref[...] * jax.lax.rsqrt(var + eps)
                z = d * scale + beta_ref[...]      # single FMA per element
                if act:
                    z = jnp.where(z >= 0.0, z, neg_slope * z)  # LeakyReLU(0.2)
                o_ref[...] = z.astype(o_ref.dtype)
    else:
        def kernel(x_ref, w_ref, b_ref, o_ref, acc_ref):
            k = pl.program_id(1)

            @pl.when(k == 0)
            def _init():
                acc_ref[...] = jnp.zeros_like(acc_ref)

            acc_ref[...] += jnp.dot(
                x_ref[...], w_ref[...], preferred_element_type=jnp.float32)

            @pl.when(k == pl.num_programs(1) - 1)
            def _finalize():
                z = acc_ref[...] + b_ref[...]
                if act:
                    z = jnp.where(z >= 0.0, z, neg_slope * z)
                o_ref[...] = z.astype(o_ref.dtype)

    return kernel


def _pick_tile(dim: int, preferred: int) -> int:
    """Largest lane-aligned tile (<= preferred) that divides `dim`,
    else the full dim (BlockSpec allows full-extent blocks)."""
    for t in (preferred, 256, 128):
        if t <= preferred and dim % t == 0:
            return t
    return dim


@functools.partial(
    jax.jit,
    static_argnames=("norm", "act", "tn", "tk", "eps", "mxu_dtype"))
def linear_block(x, w, b=None, gamma=None, beta=None, *,
                 norm: bool = True, act: bool = True,
                 tn: int = 0, tk: int = 0,
                 eps: float = 1e-5, mxu_dtype=jnp.bfloat16):
    """LinearBlock forward.

    x: (B, in_dim)   w: (in_dim, out_dim)   b/gamma/beta: (1, out_dim)
    Returns (B, out_dim) float32.
    """
    B, in_dim = x.shape
    in_dim_w, out_dim = w.shape
    assert in_dim_w == in_dim

    # Tile sizes: lane-dense (multiple of 128) when possible, capped at 256 so
    # double-buffered input tiles + accumulator fit easily in v7x's smaller
    # VMEM (64 MiB physical / 32 MiB scoped default).
    tn = tn if tn else _pick_tile(out_dim, 256)
    tk = tk if tk else _pick_tile(in_dim, 256)
    assert out_dim % tn == 0 and in_dim % tk == 0
    n_n, n_k = out_dim // tn, in_dim // tk

    # Cast MXU inputs once in the wrapper: halves weight-stream HBM bytes.
    xq = x.astype(mxu_dtype)
    wq = w.astype(mxu_dtype)

    in_specs = [
        pl.BlockSpec((B, tk), lambda n, k: (0, k)),   # full batch resident
        pl.BlockSpec((tk, tn), lambda n, k: (k, n)),
    ]
    operands = [xq, wq]
    if norm:
        in_specs += [pl.BlockSpec((1, tn), lambda n, k: (0, n)),
                     pl.BlockSpec((1, tn), lambda n, k: (0, n))]
        operands += [jnp.reshape(gamma, (1, out_dim)).astype(jnp.float32),
                     jnp.reshape(beta, (1, out_dim)).astype(jnp.float32)]
    else:
        in_specs += [pl.BlockSpec((1, tn), lambda n, k: (0, n))]
        operands += [jnp.reshape(b, (1, out_dim)).astype(jnp.float32)]

    itemsize = jnp.dtype(mxu_dtype).itemsize
    bytes_accessed = (B * in_dim * itemsize            # x
                      + in_dim * out_dim * itemsize    # w (dominant)
                      + B * out_dim * 4                # output
                      + (2 * out_dim * 4 if norm else out_dim * 4))
    cost = pl.CostEstimate(flops=2 * B * in_dim * out_dim,
                           transcendentals=out_dim if norm else 0,
                           bytes_accessed=bytes_accessed)

    kernel = _make_linear_block_kernel(norm=norm, act=act, eps=eps)

    return pl.pallas_call(
        kernel,
        out_shape=jax.ShapeDtypeStruct((B, out_dim), jnp.float32),
        grid_spec=pltpu.PrefetchScalarGridSpec(
            num_scalar_prefetch=0,
            grid=(n_n, n_k),                      # reduction axis (K) last
            in_specs=in_specs,
            out_specs=pl.BlockSpec((B, tn), lambda n, k: (0, n)),
            scratch_shapes=[pltpu.VMEM((B, tn), jnp.float32)],
        ),
        compiler_params=pltpu.CompilerParams(
            dimension_semantics=("parallel", "arbitrary")),
        cost_estimate=cost,
    )(*operands)


if __name__ == "__main__":
    # Small shapes, but lane-dense (multiples of 128) per the perf review.
    B, in_dim, out_dim = 8, 256, 256

    key = jax.random.PRNGKey(0)
    kx, kw, kb, kw2, kb2 = jax.random.split(key, 5)

    x = jax.random.normal(kx, (B, in_dim), dtype=jnp.float32)

    # nn.Linear-style init (uniform in +/- 1/sqrt(in_dim))
    bound = 1.0 / (in_dim ** 0.5)
    w = jax.random.uniform(kw, (in_dim, out_dim), jnp.float32, -bound, bound)
    b = jax.random.uniform(kb, (1, out_dim), jnp.float32, -bound, bound)

    # BatchNorm1d init: weight=1, bias=0
    gamma = jnp.ones((1, out_dim), jnp.float32)
    beta = jnp.zeros((1, out_dim), jnp.float32)

    # --- default LinearBlock: Linear -> BatchNorm1d -> LeakyReLU(0.2) ------
    # Force tn=tk=128 so the demo actually exercises the (N, K) grid,
    # init/finalize pl.when phases and the pipelined K accumulation.
    out = linear_block(x, w, b=b, gamma=gamma, beta=beta,
                       norm=True, act=True, tn=128, tk=128)
    jax.block_until_ready(out)

    # Pure-JAX reference with the same bf16 MXU-input quantization and
    # f32 accumulation / BN math.
    y = jnp.dot(x.astype(jnp.bfloat16), w.astype(jnp.bfloat16),
                preferred_element_type=jnp.float32) + b
    mu = y.mean(axis=0, keepdims=True)
    var = ((y - mu) ** 2).mean(axis=0, keepdims=True)
    z = gamma * (y - mu) * jax.lax.rsqrt(var + 1e-5) + beta
    ref = jnp.where(z >= 0.0, z, 0.2 * z)
    assert jnp.allclose(out, ref, atol=2e-3, rtol=2e-3), "norm+act mismatch"

    # --- Decoder-final-style LinearBlock(norm=False, act=False) ------------
    out_dim2 = 128
    w2 = jax.random.uniform(kw2, (out_dim, out_dim2), jnp.float32,
                            -bound, bound)
    b2 = jax.random.uniform(kb2, (1, out_dim2), jnp.float32, -bound, bound)
    out2 = linear_block(out, w2, b=b2, norm=False, act=False, tn=128, tk=128)
    jax.block_until_ready(out2)

    ref2 = jnp.dot(out.astype(jnp.bfloat16), w2.astype(jnp.bfloat16),
                   preferred_element_type=jnp.float32) + b2
    assert jnp.allclose(out2, ref2, atol=2e-3, rtol=2e-3), "linear mismatch"

    print("KERNEL_OK")
</pallas_src>

<mosaic_0001>
module attributes {stable_mosaic.version = 11 : i64} {
  func.func @kernel(%arg0: i32, %arg1: i32, %arg2: memref<8x128xbf16, #tpu.memory_space<vmem>>, %arg3: memref<128x128xbf16, #tpu.memory_space<vmem>>, %arg4: memref<1x128xf32, #tpu.memory_space<vmem>>, %arg5: memref<1x128xf32, #tpu.memory_space<vmem>>, %arg6: memref<8x128xf32, #tpu.memory_space<vmem>>, %arg7: memref<8x128xf32, #tpu.memory_space<vmem>>) attributes {dimension_semantics = [#tpu.dimension_semantics<parallel>, #tpu.dimension_semantics<arbitrary>], iteration_bounds = array<i64: 2, 2>, scalar_prefetch = 0 : i64, scratch_operands = 1 : i64, tpu.core_type = #tpu.core_type<tc>, window_params = [{transform_indices = @transform_0, window_bounds = array<i64: 8, 128>}, {transform_indices = @transform_1, window_bounds = array<i64: 128, 128>}, {transform_indices = @transform_2, window_bounds = array<i64: 1, 128>}, {transform_indices = @transform_3, window_bounds = array<i64: 1, 128>}, {transform_indices = @transform_4, window_bounds = array<i64: 8, 128>}]} {
    %c0_i32 = arith.constant 0 : i32
    %0 = arith.cmpi eq, %arg1, %c0_i32 : i32
    %1 = arith.extui %0 : i1 to i32
    %c0_i32_0 = arith.constant 0 : i32
    %2 = arith.cmpi ne, %1, %c0_i32_0 : i32
    scf.if %2 {
      %cst_9 = arith.constant 0.000000e+00 : f32
      %12 = vector.broadcast %cst_9 : f32 to vector<8x128xf32>
      %c0_10 = arith.constant 0 : index
      %c0_11 = arith.constant 0 : index
      %13 = vector.load %arg7[%c0_10, %c0_11] : memref<8x128xf32, #tpu.memory_space<vmem>>, vector<8x128xf32>
      tpu.vector_store %arg7[%c0_10, %c0_11], %12 {strides = array<i32>} : memref<8x128xf32, #tpu.memory_space<vmem>>, vector<8x128xf32>,
    } else {
    }
    %c0 = arith.constant 0 : index
    %c0_1 = arith.constant 0 : index
    %3 = vector.load %arg7[%c0, %c0_1] : memref<8x128xf32, #tpu.memory_space<vmem>>, vector<8x128xf32>
    %c0_2 = arith.constant 0 : index
    %c0_3 = arith.constant 0 : index
    %4 = vector.load %arg2[%c0_2, %c0_3] : memref<8x128xbf16, #tpu.memory_space<vmem>>, vector<8x128xbf16>
    %c0_4 = arith.constant 0 : index
    %c0_5 = arith.constant 0 : index
    %5 = vector.load %arg3[%c0_4, %c0_5] : memref<128x128xbf16, #tpu.memory_space<vmem>>, vector<128x128xbf16>
    %cst = arith.constant dense<0.000000e+00> : vector<8x128xf32>
    %6 = tpu.matmul %4, %5, %cst {dimension_numbers = #tpu.dot_dimension_numbers<[1], [0], [0], [1], [0, 0, 1, 1], [], []>} : vector<8x128xbf16>, vector<128x128xbf16>, vector<8x128xf32> -> vector<8x128xf32>
    %7 = arith.addf %3, %6 : vector<8x128xf32>
    %c0_6 = arith.constant 0 : index
    %c0_7 = arith.constant 0 : index
    %8 = vector.load %arg7[%c0_6, %c0_7] : memref<8x128xf32, #tpu.memory_space<vmem>>, vector<8x128xf32>
    tpu.vector_store %arg7[%c0_6, %c0_7], %7 {strides = array<i32>} : memref<8x128xf32, #tpu.memory_space<vmem>>, vector<8x128xf32>,
    %c1_i32 = arith.constant 1 : i32
    %9 = arith.cmpi eq, %arg1, %c1_i32 : i32
    %10 = arith.extui %9 : i1 to i32
    %c0_i32_8 = arith.constant 0 : i32
    %11 = arith.cmpi ne, %10, %c0_i32_8 : i32
    scf.if %11 {
      %c0_9 = arith.constant 0 : index
      %c0_10 = arith.constant 0 : index
      %12 = vector.load %arg7[%c0_9, %c0_10] : memref<8x128xf32, #tpu.memory_space<vmem>>, vector<8x128xf32>
      %cst_11 = arith.constant dense<0.000000e+00> : vector<128xf32>
      %13 = vector.multi_reduction <add>, %12, %cst_11 [0] : vector<8x128xf32> to vector<128xf32>
      %14 = vector.shape_cast %13 : vector<128xf32> to vector<1x128xf32>
      %cst_12 = arith.constant 8.000000e+00 : f32
      %15 = vector.broadcast %cst_12 : f32 to vector<1x128xf32>
      %16 = arith.divf %14, %15 : vector<1x128xf32>
      %17 = vector.broadcast %16 : vector<1x128xf32> to vector<8x128xf32>
      %18 = arith.subf %12, %17 : vector<8x128xf32>
      %19 = arith.mulf %18, %18 : vector<8x128xf32>
      %cst_13 = arith.constant dense<0.000000e+00> : vector<128xf32>
      %20 = vector.multi_reduction <add>, %19, %cst_13 [0] : vector<8x128xf32> to vector<128xf32>
      %21 = vector.shape_cast %20 : vector<128xf32> to vector<1x128xf32>
      %cst_14 = arith.constant 8.000000e+00 : f32
      %22 = vector.broadcast %cst_14 : f32 to vector<1x128xf32>
      %23 = arith.divf %21, %22 : vector<1x128xf32>
      %c0_15 = arith.constant 0 : index
      %c0_16 = arith.constant 0 : index
      %24 = vector.load %arg4[%c0_15, %c0_16] : memref<1x128xf32, #tpu.memory_space<vmem>>, vector<1x128xf32>
      %cst_17 = arith.constant 9.99999974E-6 : f32
      %25 = vector.broadcast %cst_17 : f32 to vector<1x128xf32>
      %26 = arith.addf %23, %25 : vector<1x128xf32>
      %27 = math.rsqrt %26 : vector<1x128xf32>
      %28 = arith.mulf %24, %27 : vector<1x128xf32>
      %29 = vector.broadcast %28 : vector<1x128xf32> to vector<8x128xf32>
      %30 = arith.mulf %18, %29 : vector<8x128xf32>
      %c0_18 = arith.constant 0 : index
      %c0_19 = arith.constant 0 : index
      %31 = vector.load %arg5[%c0_18, %c0_19] : memref<1x128xf32, #tpu.memory_space<vmem>>, vector<1x128xf32>
      %32 = vector.broadcast %31 : vector<1x128xf32> to vector<8x128xf32>
      %33 = arith.addf %30, %32 : vector<8x128xf32>
      %cst_20 = arith.constant 0.000000e+00 : f32
      %34 = vector.broadcast %cst_20 : f32 to vector<8x128xf32>
      %35 = arith.cmpf oge, %33, %34 : vector<8x128xf32>
      %cst_21 = arith.constant 2.000000e-01 : f32
      %36 = vector.broadcast %cst_21 : f32 to vector<8x128xf32>
      %37 = arith.mulf %36, %33 : vector<8x128xf32>
      %38 = arith.select %35, %33, %37 : vector<8x128xi1>, vector<8x128xf32>
      %c0_22 = arith.constant 0 : index
      %c0_23 = arith.constant 0 : index
      %39 = vector.load %arg6[%c0_22, %c0_23] : memref<8x128xf32, #tpu.memory_space<vmem>>, vector<8x128xf32>
      tpu.vector_store %arg6[%c0_22, %c0_23], %38 {strides = array<i32>} : memref<8x128xf32, #tpu.memory_space<vmem>>, vector<8x128xf32>,
    } else {
    }
    return
  }
  func.func @transform_0(%arg0: i32, %arg1: i32) -> (i32, i32) {
    %c0_i32 = arith.constant 0 : i32
    %c0_i32_0 = arith.constant 0 : i32
    return %c0_i32, %arg1 : i32, i32
  }
  func.func @transform_1(%arg0: i32, %arg1: i32) -> (i32, i32) {
    %c0_i32 = arith.constant 0 : i32
    return %arg1, %arg0 : i32, i32
  }
  func.func @transform_2(%arg0: i32, %arg1: i32) -> (i32, i32) {
    %c0_i32 = arith.constant 0 : i32
    %c0_i32_0 = arith.constant 0 : i32
    return %c0_i32, %arg0 : i32, i32
  }
  func.func @transform_3(%arg0: i32, %arg1: i32) -> (i32, i32) {
    %c0_i32 = arith.constant 0 : i32
    %c0_i32_0 = arith.constant 0 : i32
    return %c0_i32, %arg0 : i32, i32
  }
  func.func @transform_4(%arg0: i32, %arg1: i32) -> (i32, i32) {
    %c0_i32 = arith.constant 0 : i32
    %c0_i32_0 = arith.constant 0 : i32
    return %c0_i32, %arg0 : i32, i32
  }
}

</mosaic_0001>

<llo_original>
// kernel: linear_block.1
$region0: #{linear_block.1}
  #allocation0 [shape = 'u32[]', space=smem, size = 0x4, offset = 0x4, fixed_abs, tag = 'smem constant byte address 0x4 - core index']
  #allocation1 [shape = 'u32[144,128]{1,0:T(1,128)}', space=vmem, size = 0x12000, scoped, tag = 'internal scratch']
  #allocation2 [shape = 'f32[8,128]{1,0:T(8,128)}', space=vmem, size = 0x1000, scoped, tag = 'scratch operand']
  %s0 = inlined_call_operand.vmem [shape: bf16[8,256], index: 0, kind: input, shape index: {}]
  %s1 = inlined_call_operand.vmem [shape: bf16[256,256], index: 1, kind: input, shape index: {}]
  %s2 = inlined_call_operand.vmem [shape: f32[1,256], index: 2, kind: input, shape index: {}]
  %s3 = inlined_call_operand.vmem [shape: f32[1,256], index: 3, kind: input, shape index: {}]
  %s4 = inlined_call_operand.hbm [shape: f32[8,256], index: 4, kind: output, shape index: {}]
  %s5 = sld [smem:[#allocation0]]
  $region98: #{linear_block.1} parent=0
    _
  %s7 = ssub.s32 1, %s5
  %s8 = scalar_select 0, %s7, %s5
  $region1: #{linear_block.1} parent=0
    #allocation3 [shape = 'u8[65536]{0}', space=vmem, size = 0x10000, scoped, tag = 'input window, operand 1']
    #allocation4 [shape = 'u8[8192]{0}', space=vmem, size = 0x2000, scoped, tag = 'output window, operand 0']
    #allocation5 [shape = 's32[2]{0}', space=sflag, size = 0x8, scoped, tag = 'scoped memory for linear_block.1']
    %9 = vsyncpa [#allocation5], 0
    %s10 = scalar_lea.sflag [#allocation5], 1
    %11 = vsyncpa %s10, 0
    loop: start=0, step=1, limit=6
    $region2: #{linear_block.1} parent=1 // loop_pre_header
      _
    $region3: #{linear_block.1} parent=1 // loop_header
      %s13 = sphi 0, %s17
      %p14 = scmp.ge.s32.totalorder %s13, 6
      %s20 = sphi 0, %s32
      %s21 = sphi 0, %s28
      %s22 = sphi 0, %s20
      %s23 = sphi 0, %s21
      %s24 = sphi 0, %s22
      %s25 = sphi 0, %s23
      %s35 = sphi 0, %s37
      %s38 = sphi 0, %s35
      %s39 = sphi 0, %s38
      %s55 = sphi 0, %s39
      %s63 = sphi 0, %s65
      %s66 = sphi 0, %s63
      %s67 = sphi 0, %s66
      %s83 = sphi 0, %s67
      %s89 = sphi 0, %s91
      %s92 = sphi 0, %s89
      %s93 = sphi 0, %s92
      %s109 = sphi 0, %s93
      %s115 = sphi 0, %s117
      %s118 = sphi 0, %s115
      %s119 = sphi 0, %s118
      %s135 = sphi 0, %s119
      %s141 = sphi 0, %s143
      %s144 = sphi 0, %s141
      %s145 = sphi 0, %s144
      %s161 = sphi 0, %s145
    $region4: #{linear_block.1} parent=1 // loop_header_branch
      %16 = sbr.rel (%p14) target = $region8
    $region5: #{linear_block.1} parent=1 // loop_body
      %s18 = ssub.s32 %s13, 1
      %s19 = ssub.s32 %s13, 2
      %s26 = sadd.s32 1, %s21
      %p27 = scmp.ge.s32.totalorder %s26, 2
      %s28 = scalar_select %p27, 0, %s26
      %s29 = sadd.s32 1, %s20
      %s30 = scalar_select %p27, %s29, %s20
      %p31 = scmp.ge.s32.totalorder %s30, 2
      %s32 = scalar_select %p31, 0, %s30
      %s33 = ssub.s32 %s21, %s28
      %p34 = scmp.eq.s32.totalorder %s33, 0
      %s36 = sadd.s32 %s35, 1
      %s37 = scalar_select %p34, %s35, %s36
      %p40 = pneg %p34
      %p41 = scmp.eq.s32.totalorder %s13, 3
      %p42 = por %p40, %p41
      %p43 = scmp.ne.s32.totalorder %s35, %s38
      %p44 = scmp.eq.s32.totalorder %s13, 0
      %p45 = por %p43, %p44
      %p46 = scmp.ne.s32.totalorder %s35, %s38
      %p47 = scmp.eq.s32.totalorder %s18, 3
      %p48 = por %p46, %p47
      %p49 = scmp.ne.s32.totalorder %s38, %s39
      %p50 = scmp.eq.s32.totalorder %s18, 0
      %p51 = por %p49, %p50
      %p52 = scmp.ne.s32.totalorder %s38, %s39
      %p53 = scmp.eq.s32.totalorder %s19, 3
      %p54 = por %p52, %p53
      %p56 = scmp.ne.s32.totalorder %s39, %s55
      %p57 = scmp.eq.s32.totalorder %s19, 0
      %p58 = por %p56, %p57
      %s59 = ssub.s32 %s21, %s28
      %s60 = ssub.s32 %s20, %s32
      %s61 = sor.u32 %s59, %s60
      %p62 = scmp.eq.s32.totalorder %s61, 0
      %s64 = sadd.s32 %s63, 1
      %s65 = scalar_select %p62, %s63, %s64
      %p68 = pneg %p62
      %p69 = scmp.eq.s32.totalorder %s13, 3
      %p70 = por %p68, %p69
      %p71 = scmp.ne.s32.totalorder %s63, %s66
      %p72 = scmp.eq.s32.totalorder %s13, 0
      %p73 = por %p71, %p72
      %p74 = scmp.ne.s32.totalorder %s63, %s66
      %p75 = scmp.eq.s32.totalorder %s18, 3
      %p76 = por %p74, %p75
      %p77 = scmp.ne.s32.totalorder %s66, %s67
      %p78 = scmp.eq.s32.totalorder %s18, 0
      %p79 = por %p77, %p78
      %p80 = scmp.ne.s32.totalorder %s66, %s67
      %p81 = scmp.eq.s32.totalorder %s19, 3
      %p82 = por %p80, %p81
      %p84 = scmp.ne.s32.totalorder %s67, %s83
      %p85 = scmp.eq.s32.totalorder %s19, 0
      %p86 = por %p84, %p85
      %s87 = ssub.s32 %s20, %s32
      %p88 = scmp.eq.s32.totalorder %s87, 0
      %s90 = sadd.s32 %s89, 1
      %s91 = scalar_select %p88, %s89, %s90
      %p94 = pneg %p88
      %p95 = scmp.eq.s32.totalorder %s13, 3
      %p96 = por %p94, %p95
      %p97 = scmp.ne.s32.totalorder %s89, %s92
      %p98 = scmp.eq.s32.totalorder %s13, 0
      %p99 = por %p97, %p98
      %p100 = scmp.ne.s32.totalorder %s89, %s92
      %p101 = scmp.eq.s32.totalorder %s18, 3
      %p102 = por %p100, %p101
      %p103 = scmp.ne.s32.totalorder %s92, %s93
      %p104 = scmp.eq.s32.totalorder %s18, 0
      %p105 = por %p103, %p104
      %p106 = scmp.ne.s32.totalorder %s92, %s93
      %p107 = scmp.eq.s32.totalorder %s19, 3
      %p108 = por %p106, %p107
      %p110 = scmp.ne.s32.totalorder %s93, %s109
      %p111 = scmp.eq.s32.totalorder %s19, 0
      %p112 = por %p110, %p111
      %s113 = ssub.s32 %s20, %s32
      %p114 = scmp.eq.s32.totalorder %s113, 0
      %s116 = sadd.s32 %s115, 1
      %s117 = scalar_select %p114, %s115, %s116
      %p120 = pneg %p114
      %p121 = scmp.eq.s32.totalorder %s13, 3
      %p122 = por %p120, %p121
      %p123 = scmp.ne.s32.totalorder %s115, %s118
      %p124 = scmp.eq.s32.totalorder %s13, 0
      %p125 = por %p123, %p124
      %p126 = scmp.ne.s32.totalorder %s115, %s118
      %p127 = scmp.eq.s32.totalorder %s18, 3
      %p128 = por %p126, %p127
      %p129 = scmp.ne.s32.totalorder %s118, %s119
      %p130 = scmp.eq.s32.totalorder %s18, 0
      %p131 = por %p129, %p130
      %p132 = scmp.ne.s32.totalorder %s118, %s119
      %p133 = scmp.eq.s32.totalorder %s19, 3
      %p134 = por %p132, %p133
      %p136 = scmp.ne.s32.totalorder %s119, %s135
      %p137 = scmp.eq.s32.totalorder %s19, 0
      %p138 = por %p136, %p137
      %s139 = ssub.s32 %s20, %s32
      %p140 = scmp.eq.s32.totalorder %s139, 0
      %s142 = sadd.s32 %s141, 1
      %s143 = scalar_select %p140, %s141, %s142
      %p146 = pneg %p140
      %p147 = scmp.eq.s32.totalorder %s13, 3
      %p148 = por %p146, %p147
      %p149 = scmp.ne.s32.totalorder %s141, %s144
      %p150 = scmp.eq.s32.totalorder %s13, 0
      %p151 = por %p149, %p150
      %p152 = scmp.ne.s32.totalorder %s141, %s144
      %p153 = scmp.eq.s32.totalorder %s18, 3
      %p154 = por %p152, %p153
      %p155 = scmp.ne.s32.totalorder %s144, %s145
      %p156 = scmp.eq.s32.totalorder %s18, 0
      %p157 = por %p155, %p156
      %p158 = scmp.ne.s32.totalorder %s144, %s145
      %p159 = scmp.eq.s32.totalorder %s19, 3
      %p160 = por %p158, %p159
      %p162 = scmp.ne.s32.totalorder %s145, %s161
      %p163 = scmp.eq.s32.totalorder %s19, 0
      %p164 = por %p162, %p163
      %p165 = scmp.le.s32.totalorder 1, %s13
      %p166 = scmp.lt.s32.totalorder %s13, 5
      %p167 = pnand %p165, %p166
      %p168 = pneg %p167
      // Predicated region
      $region9: #{linear_block.1} parent=5 // pred_check
        _
      $region10: #{linear_block.1} parent=5 // pred_check_branch
        %170 = sbr.rel (%p167) target = $region12
      $region11: #{linear_block.1} parent=5 // pred_region
        %s171 = ssub.s32 %s13, 1
      $region12: #{linear_block.1} parent=5 // pred_fallthru
        _
      %p172 = scmp.lt.s32.totalorder %s13, 4
      // Predicated region
      $region13: #{linear_block.1} parent=5 // pred_check
        %p173 = pneg %p172
      $region14: #{linear_block.1} parent=5 // pred_check_branch
        %175 = sbr.rel (%p173) target = $region16
      $region15: #{linear_block.1} parent=5 // pred_region
        // Predicated region
        $region17: #{linear_block.1} parent=15 // pred_check
          %p176 = pneg %p45
        $region18: #{linear_block.1} parent=15 // pred_check_branch
          %178 = sbr.rel (%p176) target = $region20
        $region19: #{linear_block.1} parent=15 // pred_region
          %p179 = scmp.lt.s32.totalorder %s21, 1
          %s180 = scalar_select %p179, %s21, 1
          %s181 = smul.addr %s180, 4
          %s182 = scalar_lea.vmem %s0, %s181
        $region20: #{linear_block.1} parent=15 // pred_fallthru
          _
        // Predicated region
        $region21: #{linear_block.1} parent=15 // pred_check
          %p183 = pneg %p73
        $region22: #{linear_block.1} parent=15 // pred_check_branch
          %185 = sbr.rel (%p183) target = $region24
        $region23: #{linear_block.1} parent=15 // pred_region
          %s186 = sand.u32 %s63, 1
          %s187 = sand.u32 %s63, 1
          %s188 = smul.addr %s187, 64
          %s189 = scalar_lea.vmem [#allocation3], %s188
          %s190 = smul.u32 16, %s21
          %s191 = smul.addr %s190, 2
          %s192 = sadd.s32 %s20, %s191
          %s193 = smul.addr %s192, 4
          %s194 = scalar_lea.vmem %s1, %s193
          // Predicated region
          $region25: #{linear_block.1} parent=23 // pred_check
            _
          $region26: #{linear_block.1} parent=23 // pred_check_branch
            %196 = sbr.rel (0) target = $region28
          $region27: #{linear_block.1} parent=23 // pred_region
            // Predicated region
            $region29: #{linear_block.1} parent=27 // pred_check
              _
            $region30: #{linear_block.1} parent=27 // pred_check_branch
              %198 = sbr.rel target = $region32
            $region31: #{linear_block.1} parent=27 // pred_region
              // Predicated region
              $region44: #{linear_block.1} parent=31 // pred_check
                _
              $region45: #{linear_block.1} parent=31 // pred_check_branch
                %243 = sbr.rel (0) target = $region47
              $region46: #{linear_block.1} parent=31 // pred_region
                loop: start=0, step=1, limit=1
                $region48: #{linear_block.1} parent=46 // loop_pre_header
                  _
                $region49: #{linear_block.1} parent=46 // loop_header
                  %s245 = sphi 0, %s249
                  %p246 = scmp.ge.s32.totalorder %s245, 1
                  %s250 = sphi %s194, %s194
                  %s251 = sphi %s189, %s189
                $region50: #{linear_block.1} parent=46 // loop_header_branch
                  %248 = sbr.rel (%p246) target = $region54
                $region51: #{linear_block.1} parent=46 // loop_body
                  _
                $region52: #{linear_block.1} parent=46 // loop_footer
                  %s249 = sadd.s32 1, %s245
                $region53: #{linear_block.1} parent=46 // loop_footer_branch
                  %244 = sbr.rel target = $region49
                $region54: #{linear_block.1} parent=46 // loop_exit
                  _
                loop: start=0, step=1, limit=1
                $region55: #{linear_block.1} parent=46 // loop_pre_header
                  _
                $region56: #{linear_block.1} parent=46 // loop_header
                  %s254 = sphi 0, %s258
                  %p255 = scmp.ge.s32.totalorder %s254, 1
                  %s259 = sphi %s194, %s194
                  %s260 = sphi %s189, %s189
                $region57: #{linear_block.1} parent=46 // loop_header_branch
                  %257 = sbr.rel (%p255) target = $region61
                $region58: #{linear_block.1} parent=46 // loop_body
                  %v261 = vld [vmem:[%s259] sm:$0xf]
                  %262 = vst [vmem:[%s260] sm:$0xf] %v261
                  %v263 = vld [vmem:[%s259 + $0x8] sm:$0xf]
                  %264 = vst [vmem:[%s260 + $0x4] sm:$0xf] %v263
                  %v265 = vld [vmem:[%s259 + $0x10] sm:$0xf]
                  %266 = vst [vmem:[%s260 + $0x8] sm:$0xf] %v265
                  %v267 = vld [vmem:[%s259 + $0x18] sm:$0xf]
                  %268 = vst [vmem:[%s260 + $0xc] sm:$0xf] %v267
                  %v269 = vld [vmem:[%s259 + $0x20] sm:$0xf]
                  %270 = vst [vmem:[%s260 + $0x10] sm:$0xf] %v269
                  %v271 = vld [vmem:[%s259 + $0x28] sm:$0xf]
                  %272 = vst [vmem:[%s260 + $0x14] sm:$0xf] %v271
                  %v273 = vld [vmem:[%s259 + $0x30] sm:$0xf]
                  %274 = vst [vmem:[%s260 + $0x18] sm:$0xf] %v273
                  %v275 = vld [vmem:[%s259 + $0x38] sm:$0xf]
                  %276 = vst [vmem:[%s260 + $0x1c] sm:$0xf] %v275
                  %v277 = vld [vmem:[%s259 + $0x40] sm:$0xf]
                  %278 = vst [vmem:[%s260 + $0x20] sm:$0xf] %v277
                  %v279 = vld [vmem:[%s259 + $0x48] sm:$0xf]
                  %280 = vst [vmem:[%s260 + $0x24] sm:$0xf] %v279
                  %v281 = vld [vmem:[%s259 + $0x50] sm:$0xf]
                  %282 = vst [vmem:[%s260 + $0x28] sm:$0xf] %v281
                  %v283 = vld [vmem:[%s259 + $0x58] sm:$0xf]
                  %284 = vst [vmem:[%s260 + $0x2c] sm:$0xf] %v283
                  %v285 = vld [vmem:[%s259 + $0x60] sm:$0xf]
                  %286 = vst [vmem:[%s260 + $0x30] sm:$0xf] %v285
                  %v287 = vld [vmem:[%s259 + $0x68] sm:$0xf]
                  %288 = vst [vmem:[%s260 + $0x34] sm:$0xf] %v287
                  %v289 = vld [vmem:[%s259 + $0x70] sm:$0xf]
                  %290 = vst [vmem:[%s260 + $0x38] sm:$0xf] %v289
                  %v291 = vld [vmem:[%s259 + $0x78] sm:$0xf]
                  %292 = vst [vmem:[%s260 + $0x3c] sm:$0xf] %v291
                $region59: #{linear_block.1} parent=46 // loop_footer
                  %s258 = sadd.s32 1, %s254
                $region60: #{linear_block.1} parent=46 // loop_footer_branch
                  %253 = sbr.rel target = $region56
                $region61: #{linear_block.1} parent=46 // loop_exit
                  _
              $region47: #{linear_block.1} parent=31 // pred_fallthru
                _
            $region32: #{linear_block.1} parent=27 // pred_fallthru
              _
            // Predicated region
            $region33: #{linear_block.1} parent=27 // pred_check
              _
            $region34: #{linear_block.1} parent=27 // pred_check_branch
              %200 = sbr.rel (0) target = $region36
            $region35: #{linear_block.1} parent=27 // pred_region
              loop: start=0, step=1, limit=1
              $region37: #{linear_block.1} parent=35 // loop_pre_header
                _
              $region38: #{linear_block.1} parent=35 // loop_header
                %s203 = sphi 0, %s207
                %p204 = scmp.ge.s32.totalorder %s203, 1
                %s208 = sphi %s194, %s194
                %s209 = sphi %s189, %s189
              $region39: #{linear_block.1} parent=35 // loop_header_branch
                %206 = sbr.rel (%p204) target = $region43
              $region40: #{linear_block.1} parent=35 // loop_body
                %v210 = vld [vmem:[%s208] sm:$0xf]
                %211 = vst [vmem:[%s209] sm:$0xf] %v210
                %v212 = vld [vmem:[%s208 + $0x8] sm:$0xf]
                %213 = vst [vmem:[%s209 + $0x4] sm:$0xf] %v212
                %v214 = vld [vmem:[%s208 + $0x10] sm:$0xf]
                %215 = vst [vmem:[%s209 + $0x8] sm:$0xf] %v214
                %v216 = vld [vmem:[%s208 + $0x18] sm:$0xf]
                %217 = vst [vmem:[%s209 + $0xc] sm:$0xf] %v216
                %v218 = vld [vmem:[%s208 + $0x20] sm:$0xf]
                %219 = vst [vmem:[%s209 + $0x10] sm:$0xf] %v218
                %v220 = vld [vmem:[%s208 + $0x28] sm:$0xf]
                %221 = vst [vmem:[%s209 + $0x14] sm:$0xf] %v220
                %v222 = vld [vmem:[%s208 + $0x30] sm:$0xf]
                %223 = vst [vmem:[%s209 + $0x18] sm:$0xf] %v222
                %v224 = vld [vmem:[%s208 + $0x38] sm:$0xf]
                %225 = vst [vmem:[%s209 + $0x1c] sm:$0xf] %v224
                %v226 = vld [vmem:[%s208 + $0x40] sm:$0xf]
                %227 = vst [vmem:[%s209 + $0x20] sm:$0xf] %v226
                %v228 = vld [vmem:[%s208 + $0x48] sm:$0xf]
                %229 = vst [vmem:[%s209 + $0x24] sm:$0xf] %v228
                %v230 = vld [vmem:[%s208 + $0x50] sm:$0xf]
                %231 = vst [vmem:[%s209 + $0x28] sm:$0xf] %v230
                %v232 = vld [vmem:[%s208 + $0x58] sm:$0xf]
                %233 = vst [vmem:[%s209 + $0x2c] sm:$0xf] %v232
                %v234 = vld [vmem:[%s208 + $0x60] sm:$0xf]
                %235 = vst [vmem:[%s209 + $0x30] sm:$0xf] %v234
                %v236 = vld [vmem:[%s208 + $0x68] sm:$0xf]
                %237 = vst [vmem:[%s209 + $0x34] sm:$0xf] %v236
                %v238 = vld [vmem:[%s208 + $0x70] sm:$0xf]
                %239 = vst [vmem:[%s209 + $0x38] sm:$0xf] %v238
                %v240 = vld [vmem:[%s208 + $0x78] sm:$0xf]
                %241 = vst [vmem:[%s209 + $0x3c] sm:$0xf] %v240
              $region41: #{linear_block.1} parent=35 // loop_footer
                %s207 = sadd.s32 1, %s203
              $region42: #{linear_block.1} parent=35 // loop_footer_branch
                %202 = sbr.rel target = $region38
              $region43: #{linear_block.1} parent=35 // loop_exit
                _
            $region36: #{linear_block.1} parent=27 // pred_fallthru
              _
          $region28: #{linear_block.1} parent=23 // pred_fallthru
            _
          %293 = vnop
        $region24: #{linear_block.1} parent=15 // pred_fallthru
          _
        // Predicated region
        $region62: #{linear_block.1} parent=15 // pred_check
          %p294 = pneg %p99
        $region63: #{linear_block.1} parent=15 // pred_check_branch
          %296 = sbr.rel (%p294) target = $region65
        $region64: #{linear_block.1} parent=15 // pred_region
          %p297 = scmp.lt.s32.totalorder %s20, 1
          %s298 = scalar_select %p297, %s20, 1
          %s299 = scalar_lea.vmem %s2, %s298
        $region65: #{linear_block.1} parent=15 // pred_fallthru
          _
        // Predicated region
        $region66: #{linear_block.1} parent=15 // pred_check
          %p300 = pneg %p125
        $region67: #{linear_block.1} parent=15 // pred_check_branch
          %302 = sbr.rel (%p300) target = $region69
        $region68: #{linear_block.1} parent=15 // pred_region
          %p303 = scmp.lt.s32.totalorder %s20, 1
          %s304 = scalar_select %p303, %s20, 1
          %s305 = scalar_lea.vmem %s3, %s304
        $region69: #{linear_block.1} parent=15 // pred_fallthru
          _
      $region16: #{linear_block.1} parent=5 // pred_fallthru
        _
      %p306 = scmp.le.s32.totalorder 1, %s13
      %p307 = scmp.lt.s32.totalorder %s13, 5
      %p308 = pnand %p306, %p307
      %p309 = pneg %p308
      // Predicated region
      $region70: #{linear_block.1} parent=5 // pred_check
        _
      $region71: #{linear_block.1} parent=5 // pred_check_branch
        %311 = sbr.rel (%p308) target = $region73
      $region72: #{linear_block.1} parent=5 // pred_region
        %s312 = ssub.s32 %s13, 1
        %s313 = sand.u32 %s66, 1
        %s314 = sand.u32 %s66, 1
        %s315 = smul.addr %s314, 64
        %s316 = scalar_lea.vmem [#allocation3], %s315
        // Predicated region
        $region74: #{linear_block.1} parent=72 // pred_check
          %p317 = pneg %p79
        $region75: #{linear_block.1} parent=72 // pred_check_branch
          %319 = sbr.rel (%p317) target = $region77
        $region76: #{linear_block.1} parent=72 // pred_region
          _
        $region77: #{linear_block.1} parent=72 // pred_fallthru
          _
        %p320 = scmp.lt.s32.totalorder %s23, 1
        %s321 = scalar_select %p320, %s23, 1
        %s322 = smul.addr %s321, 4
        %s323 = scalar_lea.vmem %s0, %s322
        %p324 = pneg %p51
        %p325 = pneg %p48
        %s326 = sand.u32 %s66, 1
        %s327 = sand.u32 %s66, 1
        %s328 = smul.addr %s327, 64
        %s329 = scalar_lea.vmem [#allocation3], %s328
        %p330 = pneg %p79
        %p331 = pneg %p76
        %p332 = scmp.lt.s32.totalorder %s22, 1
        %s333 = scalar_select %p332, %s22, 1
        %s334 = scalar_lea.vmem %s2, %s333
        %p335 = pneg %p105
        %p336 = pneg %p102
        %p337 = scmp.lt.s32.totalorder %s22, 1
        %s338 = scalar_select %p337, %s22, 1
        %s339 = scalar_lea.vmem %s3, %s338
        %p340 = pneg %p131
        %p341 = pneg %p128
        %p342 = pneg %p157
        %p343 = pneg %p154
        %s344 = sand.u32 %s144, 1
        %s345 = scalar_lea.sflag [#allocation5], %s344
        %s346 = sand.u32 %s144, 1
        %s347 = smul.addr %s346, 8
        %s348 = scalar_lea.vmem [#allocation4], %s347
        %p349 = scmp.lt.s32.totalorder %s23, 1
        %s350 = scalar_select %p349, %s23, 1
        %s351 = smul.addr %s350, 4
        %s352 = scalar_lea.vmem %s0, %s351
        %s353 = smul.u32 16, %s23
        %p354 = scmp.lt.s32.totalorder %s22, 1
        %s355 = scalar_select %p354, %s22, 1
        %s356 = scalar_lea.vmem %s2, %s355
        %p357 = scmp.lt.s32.totalorder %s22, 1
        %s358 = scalar_select %p357, %s22, 1
        %s359 = scalar_lea.vmem %s3, %s358
        %p361 = scmp.eq.s32.totalorder %s23, 0
        // Predicated region
        $region78: #{linear_block.1} parent=72 // pred_check
          %p362 = pneg %p361
        $region79: #{linear_block.1} parent=72 // pred_check_branch
          %364 = sbr.rel (%p362) target = $region81
        $region80: #{linear_block.1} parent=72 // pred_region
          %365 = vst [vmem:[#allocation2] sm:$0xff] 0.0
        $region81: #{linear_block.1} parent=72 // pred_fallthru
          _
        %v366 = vld [vmem:[#allocation2] sm:$0xff]
        %v367 = vld [vmem:[%s352] sm:$0xf]
        %v368 = vld [vmem:[%s316] sm:$0xf]
        %v369 = vld [vmem:[%s316 + $0x4] sm:$0xf]
        %v370 = vld [vmem:[%s316 + $0x8] sm:$0xf]
        %v371 = vld [vmem:[%s316 + $0xc] sm:$0xf]
        %v372 = vld [vmem:[%s316 + $0x10] sm:$0xf]
        %v373 = vld [vmem:[%s316 + $0x14] sm:$0xf]
        %v374 = vld [vmem:[%s316 + $0x18] sm:$0xf]
        %v375 = vld [vmem:[%s316 + $0x1c] sm:$0xf]
        %v376 = vld [vmem:[%s316 + $0x20] sm:$0xf]
        %v377 = vld [vmem:[%s316 + $0x24] sm:$0xf]
        %v378 = vld [vmem:[%s316 + $0x28] sm:$0xf]
        %v379 = vld [vmem:[%s316 + $0x2c] sm:$0xf]
        %v380 = vld [vmem:[%s316 + $0x30] sm:$0xf]
        %v381 = vld [vmem:[%s316 + $0x34] sm:$0xf]
        %v382 = vld [vmem:[%s316 + $0x38] sm:$0xf]
        %v383 = vld [vmem:[%s316 + $0x3c] sm:$0xf]
        %v400 = vunpack.c.l.b16 %v368
        %v401 = vunpack.c.l.b16 %v369
        %v402 = vunpack.c.l.b16 %v370
        %v403 = vunpack.c.l.b16 %v371
        %v404 = vunpack.c.l.b16 %v372
        %v405 = vunpack.c.l.b16 %v373
        %v406 = vunpack.c.l.b16 %v374
        %v407 = vunpack.c.l.b16 %v375
        %v408 = vunpack.c.l.b16 %v376
        %v409 = vunpack.c.l.b16 %v377
        %v410 = vunpack.c.l.b16 %v378
        %v411 = vunpack.c.l.b16 %v379
        %v412 = vunpack.c.l.b16 %v380
        %v413 = vunpack.c.l.b16 %v381
        %v414 = vunpack.c.l.b16 %v382
        %v415 = vunpack.c.l.b16 %v383
        %v416 = vpack.c.b16 %v401, %v400
        %v417 = vpack.c.b16 %v403, %v402
        %v418 = vpack.c.b16 %v405, %v404
        %v419 = vpack.c.b16 %v407, %v406
        %v420 = vpack.c.b16 %v409, %v408
        %v421 = vpack.c.b16 %v411, %v410
        %v422 = vpack.c.b16 %v413, %v412
        %v423 = vpack.c.b16 %v415, %v414
        %432 = vmatprep.subr.bf16.mxu0 0
        %433 = vmatpush1.bf16.msra.mxu0 %v416
        %434 = vmatprep.subr.bf16.mxu0 0
        %435 = vmatpush1.bf16.msra.mxu0 %v417
        %436 = vmatprep.subr.bf16.mxu0 0
        %437 = vmatpush1.bf16.msra.mxu0 %v418
        %438 = vmatprep.subr.bf16.mxu0 0
        %439 = vmatpush1.bf16.msra.mxu0 %v419
        %440 = vmatprep.subr.bf16.mxu0 0
        %441 = vmatpush1.bf16.msra.mxu0 %v420
        %442 = vmatprep.subr.bf16.mxu0 0
        %443 = vmatpush1.bf16.msra.mxu0 %v421
        %444 = vmatprep.subr.bf16.mxu0 0
        %445 = vmatpush1.bf16.msra.mxu0 %v422
        %446 = vmatprep.subr.bf16.mxu0 0
        %447 = vmatpush1.bf16.msra.mxu0 %v423
        %448 = vmatprep.subr.bf16.mxu0 0
        %449 = vmatpush1.bf16.msra.mxu0 0
        %450 = vmatprep.subr.bf16.mxu0 0
        %451 = vmatpush1.bf16.msra.mxu0 0
        %452 = vmatprep.subr.bf16.mxu0 0
        %453 = vmatpush1.bf16.msra.mxu0 0
        %454 = vmatprep.subr.bf16.mxu0 0
        %455 = vmatpush1.bf16.msra.mxu0 0
        %456 = vmatprep.subr.bf16.mxu0 0
        %457 = vmatpush1.bf16.msra.mxu0 0
        %458 = vmatprep.subr.bf16.mxu0 0
        %459 = vmatpush1.bf16.msra.mxu0 0
        %460 = vmatprep.subr.bf16.mxu0 0
        %461 = vmatpush1.bf16.msra.mxu0 0
        %462 = vmatprep.subr.bf16.mxu0 0
        %463 = vmatpush1.bf16.msra.mxu0 0
        %464 = vmatprep.mubr.bf16.mxu0 0
        %465 = vmatmul.mubr.bf16.gmra.mrb[0].mxu0 %v367
        %v466 = vpop.f32.mrb[0].mxu0
        %v467 = vadd.f32 0.0, %v466
        %v468 = vpop.f32.mrb[0].mxu0
        %v469 = vpop.f32.mrb[0].mxu0
        %v470 = vpop.f32.mrb[0].mxu0
        %471 = vdwg.mxu0
        %v472 = vadd.f32 %v366, %v467
        %473 = vst [vmem:[#allocation2] sm:$0xff] %v472
        %p474 = scmp.eq.s32.totalorder %s23, 1
        // Predicated region
        $region82: #{linear_block.1} parent=72 // pred_check
          %p475 = pneg %p474
        $region83: #{linear_block.1} parent=72 // pred_check_branch
          %477 = sbr.rel (%p475) target = $region85
        $region84: #{linear_block.1} parent=72 // pred_region
          %v478 = vld [vmem:[#allocation2] sm:$0xff]
          %v479 = vrot.slane %v478, 4
          %v480 = vadd.f32 %v478, %v479
          %v481 = vrot.slane %v480, 2
          %v482 = vadd.f32 %v480, %v481
          %v483 = vrot.slane %v482, 1
          %v484 = vadd.f32 %v482, %v483
          %v485 = vrcp.pop 8.0
          %v486 = vmul.f32 %v484, %v485
          %v487 = vsub.f32 %v478, %v486
          %v488 = vmul.f32 %v487, %v487
          %v489 = vrot.slane %v488, 4
          %v490 = vadd.f32 %v488, %v489
          %v491 = vrot.slane %v490, 2
          %v492 = vadd.f32 %v490, %v491
          %v493 = vrot.slane %v492, 1
          %v494 = vadd.f32 %v492, %v493
          %v495 = vmul.f32 %v494, %v485
          %v496 = vld [vmem:[%s356] sm:$0x1]
          %v497 = vadd.f32 %v495, 1e-05
          %v498 = vrsqrt.pop %v497
          %v499 = vmul.f32 %v496, %v498
          %v501 = vlaneseq
          %v502 = vshrl.u32 %v501, 7
          %v503 = vsub.s32 0, %v502
          %v504 = vrot.slane %v499, %v503
          %v506 = vmul.f32 %v487, %v504
          %v507 = vld [vmem:[%s359] sm:$0x1]
          %v509 = vlaneseq
          %v510 = vshrl.u32 %v509, 7
          %v511 = vsub.s32 0, %v510
          %v512 = vrot.slane %v507, %v511
          %v514 = vadd.f32 %v506, %v512
          %vm515 = vcmp.ge.f32.partialorder %v514, 0.0
          %v516 = vmul.f32 %v514, 0.2
          %v517 = vsel %vm515, %v514, %v516
          %518 = vst [vmem:[%s348] sm:$0xff] %v517
        $region85: #{linear_block.1} parent=72 // pred_fallthru
          _
        %s519 = sand.u32 %s144, 1
        %s520 = scalar_lea.sflag [#allocation5], %s519
        %s521 = sand.u32 %s144, 1
        %s522 = smul.addr %s521, 8
        %s523 = scalar_lea.vmem [#allocation4], %s522
        // Predicated region
        $region86: #{linear_block.1} parent=72 // pred_check
          %p524 = pneg %p154
        $region87: #{linear_block.1} parent=72 // pred_check_branch
          %526 = sbr.rel (%p524) target = $region89
        $region88: #{linear_block.1} parent=72 // pred_region
          %s528 = ssub.s32 128, 128
          %529 = vsyncadd %s520, %s528
          %s530 = smul.addr %s22, 128
          %s531 = scalar_lea.hbm %s4, %s530
          %s533 = sshll.u32 %s523, 4
          %s534 = int_to_ptr.vmem [resolvable:$true] %s533
          %536 = dma.vmem_to_hbm [thread:$0]  %s534, 128, %s531, %s520
        $region89: #{linear_block.1} parent=72 // pred_fallthru
          _
      $region73: #{linear_block.1} parent=5 // pred_fallthru
        _
      %p537 = scmp.le.s32.totalorder 2, %s13
      // Predicated region
      $region90: #{linear_block.1} parent=5 // pred_check
        %p538 = pneg %p537
      $region91: #{linear_block.1} parent=5 // pred_check_branch
        %540 = sbr.rel (%p538) target = $region93
      $region92: #{linear_block.1} parent=5 // pred_region
        %s541 = ssub.s32 %s13, 2
        // Predicated region
        $region94: #{linear_block.1} parent=92 // pred_check
          %p542 = pneg %p160
        $region95: #{linear_block.1} parent=92 // pred_check_branch
          %544 = sbr.rel (%p542) target = $region97
        $region96: #{linear_block.1} parent=92 // pred_region
          %s545 = sand.u32 %s145, 1
          %s546 = scalar_lea.sflag [#allocation5], %s545
          %s547 = sand.u32 %s145, 1
          %s548 = smul.addr %s547, 8
          %s549 = scalar_lea.vmem [#allocation4], %s548
          %550 = dma.done %s546, 128
        $region97: #{linear_block.1} parent=92 // pred_fallthru
          _
      $region93: #{linear_block.1} parent=5 // pred_fallthru
        _
    $region6: #{linear_block.1} parent=1 // loop_footer
      %s17 = sadd.s32 1, %s13
    $region7: #{linear_block.1} parent=1 // loop_footer_branch
      %12 = sbr.rel target = $region3
    $region8: #{linear_block.1} parent=1 // loop_exit
      _
    %551 = vsyncpa [#allocation5], 1
    %s552 = scalar_lea.sflag [#allocation5], 1
    %553 = vsyncpa %s552, 1

</llo_original>
